<compile_context>
chip_gen: v5e
topology: v5e:2x2
jax: 0.10.0
libtpu: 0.0.40
codegen_flags: <defaults>
</compile_context>

<pallas_src>
import math
from functools import partial

import jax
import jax.numpy as jnp
from jax.experimental import pallas as pl
from jax.experimental.pallas import tpu as pltpu


def _round_up(n, m):
    return ((n + m - 1) // m) * m


def mlp_kernel(w1_ref, b1_ref, w2_ref, b2_ref, x_ref, o_ref):
    """Weights/biases in SMEM (scalars); x block is [d_in, R_blk, C], out is [R_blk, C]."""
    d_in, d_hidden = w1_ref.shape  # (2, 5) -- static

    # Hoist the input-row loads out of the hidden-unit unroll.
    xs = [x_ref[i] for i in range(d_in)]  # each [R_blk, C], fully dense

    # Layer 2 accumulator, initialized with b2.
    z = jnp.full(o_ref.shape, b2_ref[0, 0], jnp.float32)

    # Layer 1 as broadcast FMAs per hidden unit (static unroll), ReLU,
    # Dropout(p=0.2) as identity (eval mode), then fold into layer 2.
    for j in range(d_hidden):
        h = xs[0] * w1_ref[0, j] + b1_ref[0, j]
        for i in range(1, d_in):
            h = h + xs[i] * w1_ref[i, j]
        h = jnp.maximum(h, 0.0)
        z = z + w2_ref[j, 0] * h

    # Exact sigmoid: exp on the EUP, true divide for parity with torch.
    o_ref[...] = (1.0 / (1.0 + jnp.exp(-z))).astype(o_ref.dtype)


@partial(jax.jit, static_argnames=("lane", "block_elems"))
def mlp_forward(x, w1, b1, w2, b2, *, lane=512, block_elems=262144):
    """x: [B, 2] float32 -> [B, 1] float32 (eval-mode forward)."""
    B, d_in = x.shape
    d_hidden = w1.shape[1]
    assert b1.shape == (1, d_hidden) and w2.shape == (d_hidden, 1)

    # --- dense [d_in, R, C] layout over the batch --------------------------
    C = lane                                              # lane axis (mult of 128)
    R_total = _round_up(max(pl.cdiv(B, C), 1), 8)         # sublane rows (mult of 8)
    R_blk = _round_up(max(block_elems // C, 8), 8)        # rows per grid block
    R_blk = min(R_blk, R_total)
    # Prefer >=2 grid steps when there is enough work (v7x megacore sharding).
    if R_total >= 16 and R_blk >= R_total:
        R_blk = _round_up(-(-R_total // 2), 8)
    grid_n = pl.cdiv(R_total, R_blk)
    R_total = grid_n * R_blk
    b_pad = R_total * C

    # Feature-major, padded, reshaped to [d_in, R_total, C] (fuses under jit).
    x_t = jnp.pad(x.astype(jnp.float32).T, ((0, 0), (0, b_pad - B)))
    x_r = x_t.reshape(d_in, R_total, C)

    smem = pl.BlockSpec(memory_space=pltpu.MemorySpace.SMEM)

    out_r = pl.pallas_call(
        mlp_kernel,
        out_shape=jax.ShapeDtypeStruct((R_total, C), jnp.float32),
        grid=(grid_n,),
        in_specs=[
            smem,  # w1 [2, 5]
            smem,  # b1 [1, 5]
            smem,  # w2 [5, 1]
            smem,  # b2 [1, 1]
            pl.BlockSpec((d_in, R_blk, C), lambda i: (0, i, 0)),  # x [2, R, C]
        ],
        out_specs=pl.BlockSpec((R_blk, C), lambda i: (i, 0)),
        compiler_params=pltpu.CompilerParams(
            dimension_semantics=("parallel",),
        ),
    )(w1, b1, w2, b2, x_r)

    # Flatten back to batch order (row-major [R, C] == batch index r*C + c);
    # final "transpose" to [B, 1] is just a reshape.
    return out_r.reshape(-1)[:B].reshape(B, 1)


def init_linear_params(key, fan_in, fan_out):
    """Deterministic init mimicking torch.nn.Linear default (uniform +/- 1/sqrt(fan_in))."""
    kw, kb = jax.random.split(key)
    bound = 1.0 / math.sqrt(fan_in)
    # Stored already transposed: [in, out]
    w = jax.random.uniform(kw, (fan_in, fan_out), jnp.float32, -bound, bound)
    b = jax.random.uniform(kb, (1, fan_out), jnp.float32, -bound, bound)
    return w, b


def _reference(x, w1, b1, w2, b2):
    h = jnp.maximum(x @ w1 + b1, 0.0)  # Dropout = identity in eval mode
    return jax.nn.sigmoid(h @ w2 + b2)


if __name__ == "__main__":
    units_per_layer = [2, 5, 1]
    batch = 8

    root = jax.random.PRNGKey(0)
    k_x, k_l1, k_l2 = jax.random.split(root, 3)

    x = jax.random.normal(k_x, (batch, units_per_layer[0]), jnp.float32)
    w1, b1 = init_linear_params(k_l1, units_per_layer[0], units_per_layer[1])
    w2, b2 = init_linear_params(k_l2, units_per_layer[1], units_per_layer[2])

    out = jax.block_until_ready(mlp_forward(x, w1, b1, w2, b2))
    ref = _reference(x, w1, b1, w2, b2)
    assert out.shape == (batch, 1)
    assert jnp.allclose(out, ref, atol=1e-5, rtol=1e-5), (out, ref)

    # Secondary check: batch size that is not a tile multiple and spans
    # multiple grid blocks (exercises padding, the row grid, and the
    # parallel split across blocks).
    k_x2 = jax.random.fold_in(root, 7)
    x2 = jax.random.normal(k_x2, (1536, units_per_layer[0]), jnp.float32)
    out2 = jax.block_until_ready(
        mlp_forward(x2, w1, b1, w2, b2, lane=128, block_elems=1024)
    )
    ref2 = _reference(x2, w1, b1, w2, b2)
    assert out2.shape == (1536, 1)
    assert jnp.allclose(out2, ref2, atol=1e-5, rtol=1e-5)

    # Tertiary check: ragged batch (not lane-aligned).
    k_x3 = jax.random.fold_in(root, 11)
    x3 = jax.random.normal(k_x3, (300, units_per_layer[0]), jnp.float32)
    out3 = jax.block_until_ready(mlp_forward(x3, w1, b1, w2, b2))
    ref3 = _reference(x3, w1, b1, w2, b2)
    assert out3.shape == (300, 1)
    assert jnp.allclose(out3, ref3, atol=1e-5, rtol=1e-5)

    print("KERNEL_OK")
</pallas_src>

<mosaic_0001>
module attributes {stable_mosaic.version = 11 : i64} {
  func.func @mlp_kernel(%arg0: i32, %arg1: memref<2x5xf32, #tpu.memory_space<smem>>, %arg2: memref<1x5xf32, #tpu.memory_space<smem>>, %arg3: memref<5x1xf32, #tpu.memory_space<smem>>, %arg4: memref<1x1xf32, #tpu.memory_space<smem>>, %arg5: memref<2x8x512xf32, #tpu.memory_space<vmem>>, %arg6: memref<8x512xf32, #tpu.memory_space<vmem>>) attributes {dimension_semantics = [#tpu.dimension_semantics<parallel>], iteration_bounds = array<i64: 1>, scalar_prefetch = 0 : i64, scratch_operands = 0 : i64, tpu.core_type = #tpu.core_type<tc>, window_params = [{transform_indices = @transform_0, window_bounds = array<i64: 2, 5>}, {transform_indices = @transform_1, window_bounds = array<i64: 1, 5>}, {transform_indices = @transform_2, window_bounds = array<i64: 5, 1>}, {transform_indices = @transform_3, window_bounds = array<i64: 1, 1>}, {transform_indices = @transform_4, window_bounds = array<i64: 2, 8, 512>}, {transform_indices = @transform_5, window_bounds = array<i64: 8, 512>}]} {
    %c0 = arith.constant 0 : index
    %c0_0 = arith.constant 0 : index
    %c0_1 = arith.constant 0 : index
    %0 = vector.load %arg5[%c0, %c0_0, %c0_1] : memref<2x8x512xf32, #tpu.memory_space<vmem>>, vector<1x8x512xf32>
    %1 = vector.shape_cast %0 : vector<1x8x512xf32> to vector<8x512xf32>
    %c1 = arith.constant 1 : index
    %c0_2 = arith.constant 0 : index
    %c0_3 = arith.constant 0 : index
    %2 = vector.load %arg5[%c1, %c0_2, %c0_3] : memref<2x8x512xf32, #tpu.memory_space<vmem>>, vector<1x8x512xf32>
    %3 = vector.shape_cast %2 : vector<1x8x512xf32> to vector<8x512xf32>
    %c0_4 = arith.constant 0 : index
    %c0_5 = arith.constant 0 : index
    %4 = memref.load %arg4[%c0_4, %c0_5] : memref<1x1xf32, #tpu.memory_space<smem>>
    %5 = vector.broadcast %4 : f32 to vector<8x512xf32>
    %c0_6 = arith.constant 0 : index
    %c0_7 = arith.constant 0 : index
    %6 = memref.load %arg1[%c0_6, %c0_7] : memref<2x5xf32, #tpu.memory_space<smem>>
    %7 = vector.broadcast %6 : f32 to vector<8x512xf32>
    %8 = arith.mulf %1, %7 : vector<8x512xf32>
    %c0_8 = arith.constant 0 : index
    %c0_9 = arith.constant 0 : index
    %9 = memref.load %arg2[%c0_8, %c0_9] : memref<1x5xf32, #tpu.memory_space<smem>>
    %10 = vector.broadcast %9 : f32 to vector<8x512xf32>
    %11 = arith.addf %8, %10 : vector<8x512xf32>
    %c1_10 = arith.constant 1 : index
    %c0_11 = arith.constant 0 : index
    %12 = memref.load %arg1[%c1_10, %c0_11] : memref<2x5xf32, #tpu.memory_space<smem>>
    %13 = vector.broadcast %12 : f32 to vector<8x512xf32>
    %14 = arith.mulf %3, %13 : vector<8x512xf32>
    %15 = arith.addf %11, %14 : vector<8x512xf32>
    %cst = arith.constant 0.000000e+00 : f32
    %16 = vector.broadcast %cst : f32 to vector<8x512xf32>
    %17 = arith.maximumf %15, %16 : vector<8x512xf32>
    %c0_12 = arith.constant 0 : index
    %c0_13 = arith.constant 0 : index
    %18 = memref.load %arg3[%c0_12, %c0_13] : memref<5x1xf32, #tpu.memory_space<smem>>
    %19 = vector.broadcast %18 : f32 to vector<8x512xf32>
    %20 = arith.mulf %19, %17 : vector<8x512xf32>
    %21 = arith.addf %5, %20 : vector<8x512xf32>
    %c0_14 = arith.constant 0 : index
    %c1_15 = arith.constant 1 : index
    %22 = memref.load %arg1[%c0_14, %c1_15] : memref<2x5xf32, #tpu.memory_space<smem>>
    %23 = vector.broadcast %22 : f32 to vector<8x512xf32>
    %24 = arith.mulf %1, %23 : vector<8x512xf32>
    %c0_16 = arith.constant 0 : index
    %c1_17 = arith.constant 1 : index
    %25 = memref.load %arg2[%c0_16, %c1_17] : memref<1x5xf32, #tpu.memory_space<smem>>
    %26 = vector.broadcast %25 : f32 to vector<8x512xf32>
    %27 = arith.addf %24, %26 : vector<8x512xf32>
    %c1_18 = arith.constant 1 : index
    %c1_19 = arith.constant 1 : index
    %28 = memref.load %arg1[%c1_18, %c1_19] : memref<2x5xf32, #tpu.memory_space<smem>>
    %29 = vector.broadcast %28 : f32 to vector<8x512xf32>
    %30 = arith.mulf %3, %29 : vector<8x512xf32>
    %31 = arith.addf %27, %30 : vector<8x512xf32>
    %cst_20 = arith.constant 0.000000e+00 : f32
    %32 = vector.broadcast %cst_20 : f32 to vector<8x512xf32>
    %33 = arith.maximumf %31, %32 : vector<8x512xf32>
    %c1_21 = arith.constant 1 : index
    %c0_22 = arith.constant 0 : index
    %34 = memref.load %arg3[%c1_21, %c0_22] : memref<5x1xf32, #tpu.memory_space<smem>>
    %35 = vector.broadcast %34 : f32 to vector<8x512xf32>
    %36 = arith.mulf %35, %33 : vector<8x512xf32>
    %37 = arith.addf %21, %36 : vector<8x512xf32>
    %c0_23 = arith.constant 0 : index
    %c2 = arith.constant 2 : index
    %38 = memref.load %arg1[%c0_23, %c2] : memref<2x5xf32, #tpu.memory_space<smem>>
    %39 = vector.broadcast %38 : f32 to vector<8x512xf32>
    %40 = arith.mulf %1, %39 : vector<8x512xf32>
    %c0_24 = arith.constant 0 : index
    %c2_25 = arith.constant 2 : index
    %41 = memref.load %arg2[%c0_24, %c2_25] : memref<1x5xf32, #tpu.memory_space<smem>>
    %42 = vector.broadcast %41 : f32 to vector<8x512xf32>
    %43 = arith.addf %40, %42 : vector<8x512xf32>
    %c1_26 = arith.constant 1 : index
    %c2_27 = arith.constant 2 : index
    %44 = memref.load %arg1[%c1_26, %c2_27] : memref<2x5xf32, #tpu.memory_space<smem>>
    %45 = vector.broadcast %44 : f32 to vector<8x512xf32>
    %46 = arith.mulf %3, %45 : vector<8x512xf32>
    %47 = arith.addf %43, %46 : vector<8x512xf32>
    %cst_28 = arith.constant 0.000000e+00 : f32
    %48 = vector.broadcast %cst_28 : f32 to vector<8x512xf32>
    %49 = arith.maximumf %47, %48 : vector<8x512xf32>
    %c2_29 = arith.constant 2 : index
    %c0_30 = arith.constant 0 : index
    %50 = memref.load %arg3[%c2_29, %c0_30] : memref<5x1xf32, #tpu.memory_space<smem>>
    %51 = vector.broadcast %50 : f32 to vector<8x512xf32>
    %52 = arith.mulf %51, %49 : vector<8x512xf32>
    %53 = arith.addf %37, %52 : vector<8x512xf32>
    %c0_31 = arith.constant 0 : index
    %c3 = arith.constant 3 : index
    %54 = memref.load %arg1[%c0_31, %c3] : memref<2x5xf32, #tpu.memory_space<smem>>
    %55 = vector.broadcast %54 : f32 to vector<8x512xf32>
    %56 = arith.mulf %1, %55 : vector<8x512xf32>
    %c0_32 = arith.constant 0 : index
    %c3_33 = arith.constant 3 : index
    %57 = memref.load %arg2[%c0_32, %c3_33] : memref<1x5xf32, #tpu.memory_space<smem>>
    %58 = vector.broadcast %57 : f32 to vector<8x512xf32>
    %59 = arith.addf %56, %58 : vector<8x512xf32>
    %c1_34 = arith.constant 1 : index
    %c3_35 = arith.constant 3 : index
    %60 = memref.load %arg1[%c1_34, %c3_35] : memref<2x5xf32, #tpu.memory_space<smem>>
    %61 = vector.broadcast %60 : f32 to vector<8x512xf32>
    %62 = arith.mulf %3, %61 : vector<8x512xf32>
    %63 = arith.addf %59, %62 : vector<8x512xf32>
    %cst_36 = arith.constant 0.000000e+00 : f32
    %64 = vector.broadcast %cst_36 : f32 to vector<8x512xf32>
    %65 = arith.maximumf %63, %64 : vector<8x512xf32>
    %c3_37 = arith.constant 3 : index
    %c0_38 = arith.constant 0 : index
    %66 = memref.load %arg3[%c3_37, %c0_38] : memref<5x1xf32, #tpu.memory_space<smem>>
    %67 = vector.broadcast %66 : f32 to vector<8x512xf32>
    %68 = arith.mulf %67, %65 : vector<8x512xf32>
    %69 = arith.addf %53, %68 : vector<8x512xf32>
    %c0_39 = arith.constant 0 : index
    %c4 = arith.constant 4 : index
    %70 = memref.load %arg1[%c0_39, %c4] : memref<2x5xf32, #tpu.memory_space<smem>>
    %71 = vector.broadcast %70 : f32 to vector<8x512xf32>
    %72 = arith.mulf %1, %71 : vector<8x512xf32>
    %c0_40 = arith.constant 0 : index
    %c4_41 = arith.constant 4 : index
    %73 = memref.load %arg2[%c0_40, %c4_41] : memref<1x5xf32, #tpu.memory_space<smem>>
    %74 = vector.broadcast %73 : f32 to vector<8x512xf32>
    %75 = arith.addf %72, %74 : vector<8x512xf32>
    %c1_42 = arith.constant 1 : index
    %c4_43 = arith.constant 4 : index
    %76 = memref.load %arg1[%c1_42, %c4_43] : memref<2x5xf32, #tpu.memory_space<smem>>
    %77 = vector.broadcast %76 : f32 to vector<8x512xf32>
    %78 = arith.mulf %3, %77 : vector<8x512xf32>
    %79 = arith.addf %75, %78 : vector<8x512xf32>
    %cst_44 = arith.constant 0.000000e+00 : f32
    %80 = vector.broadcast %cst_44 : f32 to vector<8x512xf32>
    %81 = arith.maximumf %79, %80 : vector<8x512xf32>
    %c4_45 = arith.constant 4 : index
    %c0_46 = arith.constant 0 : index
    %82 = memref.load %arg3[%c4_45, %c0_46] : memref<5x1xf32, #tpu.memory_space<smem>>
    %83 = vector.broadcast %82 : f32 to vector<8x512xf32>
    %84 = arith.mulf %83, %81 : vector<8x512xf32>
    %85 = arith.addf %69, %84 : vector<8x512xf32>
    %cst_47 = arith.constant 0.000000e+00 : f32
    %86 = vector.broadcast %cst_47 : f32 to vector<8x512xf32>
    %87 = arith.subf %86, %85 : vector<8x512xf32>
    %88 = math.exp %87 : vector<8x512xf32>
    %cst_48 = arith.constant 1.000000e+00 : f32
    %89 = vector.broadcast %cst_48 : f32 to vector<8x512xf32>
    %90 = arith.addf %89, %88 : vector<8x512xf32>
    %cst_49 = arith.constant 1.000000e+00 : f32
    %91 = vector.broadcast %cst_49 : f32 to vector<8x512xf32>
    %92 = arith.divf %91, %90 : vector<8x512xf32>
    %c0_50 = arith.constant 0 : index
    %c0_51 = arith.constant 0 : index
    %93 = vector.load %arg6[%c0_50, %c0_51] : memref<8x512xf32, #tpu.memory_space<vmem>>, vector<8x512xf32>
    tpu.vector_store %arg6[%c0_50, %c0_51], %92 {strides = array<i32>} : memref<8x512xf32, #tpu.memory_space<vmem>>, vector<8x512xf32>,
    return
  }
  func.func @transform_0(%arg0: i32) -> (i32, i32) {
    %c0_i32 = arith.constant 0 : i32
    %c0_i32_0 = arith.constant 0 : i32
    %c0_i32_1 = arith.constant 0 : i32
    return %c0_i32, %c0_i32_0 : i32, i32
  }
  func.func @transform_1(%arg0: i32) -> (i32, i32) {
    %c0_i32 = arith.constant 0 : i32
    %c0_i32_0 = arith.constant 0 : i32
    %c0_i32_1 = arith.constant 0 : i32
    return %c0_i32, %c0_i32_0 : i32, i32
  }
  func.func @transform_2(%arg0: i32) -> (i32, i32) {
    %c0_i32 = arith.constant 0 : i32
    %c0_i32_0 = arith.constant 0 : i32
    %c0_i32_1 = arith.constant 0 : i32
    return %c0_i32, %c0_i32_0 : i32, i32
  }
  func.func @transform_3(%arg0: i32) -> (i32, i32) {
    %c0_i32 = arith.constant 0 : i32
    %c0_i32_0 = arith.constant 0 : i32
    %c0_i32_1 = arith.constant 0 : i32
    return %c0_i32, %c0_i32_0 : i32, i32
  }
  func.func @transform_4(%arg0: i32) -> (i32, i32, i32) {
    %c0_i32 = arith.constant 0 : i32
    %c0_i32_0 = arith.constant 0 : i32
    %c0_i32_1 = arith.constant 0 : i32
    return %c0_i32, %arg0, %c0_i32_0 : i32, i32, i32
  }
  func.func @transform_5(%arg0: i32) -> (i32, i32) {
    %c0_i32 = arith.constant 0 : i32
    %c0_i32_0 = arith.constant 0 : i32
    return %arg0, %c0_i32 : i32, i32
  }
}

</mosaic_0001>

<llo_original>
// kernel: mlp_forward.1
$region0: #{mlp_forward.1}
  #allocation0 [shape = 'u32[]', space=smem, size = 0x4, offset = 0x4, fixed_abs, tag = 'smem constant byte address 0x4 - core index']
  #allocation1 [shape = 'u32[72,128]{1,0:T(1,128)}', space=vmem, size = 0x9000, scoped, tag = 'internal scratch']
  #allocation2 [shape = 'f32[1,1]{1,0:T(1,128)S(6)}', space=smem, size = 0x200, scoped, tag = 'scoped memory for mlp_forward.1']
  %s0 = inlined_call_operand.vmem [shape: f32[2,5], index: 0, kind: input, shape index: {}]
  %s1 = inlined_call_operand.vmem [shape: f32[1,5], index: 1, kind: input, shape index: {}]
  %s2 = inlined_call_operand.vmem [shape: f32[5,1], index: 2, kind: input, shape index: {}]
  %s3 = inlined_call_operand.<no memory space> [shape: f32[1,1], index: 3, kind: input, shape index: {}]
  %s4 = inlined_call_operand.vmem [shape: f32[2,8,512], index: 4, kind: input, shape index: {}]
  %s5 = inlined_call_operand.vmem [shape: f32[8,512], index: 5, kind: output, shape index: {}]
  %s6 = sld [smem:[#allocation0]]
  $region42: #{mlp_forward.1} parent=0
    _
  %s8 = ssub.s32 1, %s6
  %s9 = scalar_select 0, %s8, %s6
  %10 = sst [smem:[#allocation2]] %s3
  $region1: #{mlp_forward.1} parent=0
    #allocation3 [shape = 'u8[1024]{0}', space=smem, size = 0x400, scoped, tag = 'input window, operand 0, single buffered']
    #allocation4 [shape = 's32[1]{0}', space=sflag, size = 0x4, scoped, tag = 'scoped memory for mlp_forward.1']
    #allocation5 [shape = 'u8[512]{0}', space=smem, size = 0x200, scoped, tag = 'input window, operand 1, single buffered']
    #allocation6 [shape = 's32[1]{0}', space=sflag, size = 0x4, scoped, tag = 'scoped memory for mlp_forward.1']
    #allocation7 [shape = 'u8[4096]{0}', space=smem, size = 0x1000, scoped, tag = 'input window, operand 2, single buffered']
    %11 = vsyncpa [#allocation4], 0
    %12 = vsyncpa [#allocation6], 0
    // Predicated region
    $region2: #{mlp_forward.1} parent=1 // pred_check
      _
    $region3: #{mlp_forward.1} parent=1 // pred_check_branch
      %14 = sbr.rel (0) target = $region5
    $region4: #{mlp_forward.1} parent=1 // pred_region
      %16 = vsyncadd [#allocation4], 0
      %s18 = sshll.u32 %s0, 4
      %s19 = int_to_ptr.vmem [resolvable:$true] %s18
      %21 = dma.vmem_to_smem %s19, 32, [#allocation3], [#allocation4]
    $region5: #{mlp_forward.1} parent=1 // pred_fallthru
      _
    // Predicated region
    $region6: #{mlp_forward.1} parent=1 // pred_check
      _
    $region7: #{mlp_forward.1} parent=1 // pred_check_branch
      %23 = sbr.rel (0) target = $region9
    $region8: #{mlp_forward.1} parent=1 // pred_region
      %25 = vsyncadd [#allocation6], 0
      %s27 = sshll.u32 %s1, 4
      %s28 = int_to_ptr.vmem [resolvable:$true] %s27
      %30 = dma.vmem_to_smem %s28, 16, [#allocation5], [#allocation6]
    $region9: #{mlp_forward.1} parent=1 // pred_fallthru
      _
    // Predicated region
    $region10: #{mlp_forward.1} parent=1 // pred_check
      _
    $region11: #{mlp_forward.1} parent=1 // pred_check_branch
      %32 = sbr.rel (0) target = $region13
    $region12: #{mlp_forward.1} parent=1 // pred_region
      %34 = vsyncadd [#allocation6], 0
      %s36 = sshll.u32 %s2, 4
      %s37 = int_to_ptr.vmem [resolvable:$true] %s36
      %39 = dma.vmem_to_smem %s37, 128, [#allocation7], [#allocation6]
    $region13: #{mlp_forward.1} parent=1 // pred_fallthru
      _
    // Predicated region
    $region14: #{mlp_forward.1} parent=1 // pred_check
      _
    $region15: #{mlp_forward.1} parent=1 // pred_check_branch
      %41 = sbr.rel (0) target = $region17
    $region16: #{mlp_forward.1} parent=1 // pred_region
      _
    $region17: #{mlp_forward.1} parent=1 // pred_fallthru
      _
    // Predicated region
    $region18: #{mlp_forward.1} parent=1 // pred_check
      _
    $region19: #{mlp_forward.1} parent=1 // pred_check_branch
      %43 = sbr.rel (0) target = $region21
    $region20: #{mlp_forward.1} parent=1 // pred_region
      _
    $region21: #{mlp_forward.1} parent=1 // pred_fallthru
      _
    // Predicated region
    $region22: #{mlp_forward.1} parent=1 // pred_check
      _
    $region23: #{mlp_forward.1} parent=1 // pred_check_branch
      %45 = sbr.rel (0) target = $region25
    $region24: #{mlp_forward.1} parent=1 // pred_region
      %47 = dma.done [#allocation4], 32
    $region25: #{mlp_forward.1} parent=1 // pred_fallthru
      _
    // Predicated region
    $region26: #{mlp_forward.1} parent=1 // pred_check
      _
    $region27: #{mlp_forward.1} parent=1 // pred_check_branch
      %49 = sbr.rel (0) target = $region29
    $region28: #{mlp_forward.1} parent=1 // pred_region
      %51 = dma.done [#allocation6], 16
    $region29: #{mlp_forward.1} parent=1 // pred_fallthru
      _
    // Predicated region
    $region30: #{mlp_forward.1} parent=1 // pred_check
      _
    $region31: #{mlp_forward.1} parent=1 // pred_check_branch
      %53 = sbr.rel (0) target = $region33
    $region32: #{mlp_forward.1} parent=1 // pred_region
      %55 = dma.done [#allocation6], 128
    $region33: #{mlp_forward.1} parent=1 // pred_fallthru
      _
    %56 = sfence
    %v57 = vld [vmem:[%s4] sm:$0xff]
    %v58 = vld [vmem:[%s4 + $0x8] sm:$0xff]
    %v59 = vld [vmem:[%s4 + $0x10] sm:$0xff]
    %v60 = vld [vmem:[%s4 + $0x18] sm:$0xff]
    %s61 = scalar_lea.vmem %s4, 32
    %v62 = vld [vmem:[%s61] sm:$0xff]
    %v63 = vld [vmem:[%s61 + $0x8] sm:$0xff]
    %v64 = vld [vmem:[%s61 + $0x10] sm:$0xff]
    %v65 = vld [vmem:[%s61 + $0x18] sm:$0xff]
    %s66 = sld [smem:[#allocation2]]
    %v67 = vstv %s66
    %s68 = sld [smem:[#allocation3]]
    %v69 = vstv %s68
    %v70 = vmul.f32 %v57, %v69
    %v71 = vmul.f32 %v58, %v69
    %v72 = vmul.f32 %v59, %v69
    %v73 = vmul.f32 %v60, %v69
    %s74 = sld [smem:[#allocation5]]
    %v75 = vstv %s74
    %v76 = vadd.f32 %v70, %v75
    %v77 = vadd.f32 %v71, %v75
    %v78 = vadd.f32 %v72, %v75
    %v79 = vadd.f32 %v73, %v75
    %s80 = sld [smem:[#allocation3 + $0x80]]
    %v81 = vstv %s80
    %v82 = vmul.f32 %v62, %v81
    %v83 = vmul.f32 %v63, %v81
    %v84 = vmul.f32 %v64, %v81
    %v85 = vmul.f32 %v65, %v81
    %v86 = vadd.f32 %v76, %v82
    %v87 = vadd.f32 %v77, %v83
    %v88 = vadd.f32 %v78, %v84
    %v89 = vadd.f32 %v79, %v85
    %v90 = vmax.f32 %v86, 0.0
    %v91 = vmax.f32 %v87, 0.0
    %v92 = vmax.f32 %v88, 0.0
    %v93 = vmax.f32 %v89, 0.0
    %s94 = sld [smem:[#allocation7]]
    %v95 = vstv %s94
    %v96 = vmul.f32 %v95, %v90
    %v97 = vmul.f32 %v95, %v91
    %v98 = vmul.f32 %v95, %v92
    %v99 = vmul.f32 %v95, %v93
    %v100 = vadd.f32 %v67, %v96
    %v101 = vadd.f32 %v67, %v97
    %v102 = vadd.f32 %v67, %v98
    %v103 = vadd.f32 %v67, %v99
    %s104 = sld [smem:[#allocation3 + $0x1]]
    %v105 = vstv %s104
    %v106 = vmul.f32 %v57, %v105
    %v107 = vmul.f32 %v58, %v105
    %v108 = vmul.f32 %v59, %v105
    %v109 = vmul.f32 %v60, %v105
    %s110 = sld [smem:[#allocation5 + $0x1]]
    %v111 = vstv %s110
    %v112 = vadd.f32 %v106, %v111
    %v113 = vadd.f32 %v107, %v111
    %v114 = vadd.f32 %v108, %v111
    %v115 = vadd.f32 %v109, %v111
    %s116 = sld [smem:[#allocation3 + $0x81]]
    %v117 = vstv %s116
    %v118 = vmul.f32 %v62, %v117
    %v119 = vmul.f32 %v63, %v117
    %v120 = vmul.f32 %v64, %v117
    %v121 = vmul.f32 %v65, %v117
    %v122 = vadd.f32 %v112, %v118
    %v123 = vadd.f32 %v113, %v119
    %v124 = vadd.f32 %v114, %v120
    %v125 = vadd.f32 %v115, %v121
    %v126 = vmax.f32 %v122, 0.0
    %v127 = vmax.f32 %v123, 0.0
    %v128 = vmax.f32 %v124, 0.0
    %v129 = vmax.f32 %v125, 0.0
    %s130 = sld [smem:[#allocation7 + $0x80]]
    %v131 = vstv %s130
    %v132 = vmul.f32 %v131, %v126
    %v133 = vmul.f32 %v131, %v127
    %v134 = vmul.f32 %v131, %v128
    %v135 = vmul.f32 %v131, %v129
    %v136 = vadd.f32 %v100, %v132
    %v137 = vadd.f32 %v101, %v133
    %v138 = vadd.f32 %v102, %v134
    %v139 = vadd.f32 %v103, %v135
    %s140 = sld [smem:[#allocation3 + $0x2]]
    %v141 = vstv %s140
    %v142 = vmul.f32 %v57, %v141
    %v143 = vmul.f32 %v58, %v141
    %v144 = vmul.f32 %v59, %v141
    %v145 = vmul.f32 %v60, %v141
    %s146 = sld [smem:[#allocation5 + $0x2]]
    %v147 = vstv %s146
    %v148 = vadd.f32 %v142, %v147
    %v149 = vadd.f32 %v143, %v147
    %v150 = vadd.f32 %v144, %v147
    %v151 = vadd.f32 %v145, %v147
    %s152 = sld [smem:[#allocation3 + $0x82]]
    %v153 = vstv %s152
    %v154 = vmul.f32 %v62, %v153
    %v155 = vmul.f32 %v63, %v153
    %v156 = vmul.f32 %v64, %v153
    %v157 = vmul.f32 %v65, %v153
    %v158 = vadd.f32 %v148, %v154
    %v159 = vadd.f32 %v149, %v155
    %v160 = vadd.f32 %v150, %v156
    %v161 = vadd.f32 %v151, %v157
    %v162 = vmax.f32 %v158, 0.0
    %v163 = vmax.f32 %v159, 0.0
    %v164 = vmax.f32 %v160, 0.0
    %v165 = vmax.f32 %v161, 0.0
    %s166 = sld [smem:[#allocation7 + $0x100]]
    %v167 = vstv %s166
    %v168 = vmul.f32 %v167, %v162
    %v169 = vmul.f32 %v167, %v163
    %v170 = vmul.f32 %v167, %v164
    %v171 = vmul.f32 %v167, %v165
    %v172 = vadd.f32 %v136, %v168
    %v173 = vadd.f32 %v137, %v169
    %v174 = vadd.f32 %v138, %v170
    %v175 = vadd.f32 %v139, %v171
    %s176 = sld [smem:[#allocation3 + $0x3]]
    %v177 = vstv %s176
    %v178 = vmul.f32 %v57, %v177
    %v179 = vmul.f32 %v58, %v177
    %v180 = vmul.f32 %v59, %v177
    %v181 = vmul.f32 %v60, %v177
    %s182 = sld [smem:[#allocation5 + $0x3]]
    %v183 = vstv %s182
    %v184 = vadd.f32 %v178, %v183
    %v185 = vadd.f32 %v179, %v183
    %v186 = vadd.f32 %v180, %v183
    %v187 = vadd.f32 %v181, %v183
    %s188 = sld [smem:[#allocation3 + $0x83]]
    %v189 = vstv %s188
    %v190 = vmul.f32 %v62, %v189
    %v191 = vmul.f32 %v63, %v189
    %v192 = vmul.f32 %v64, %v189
    %v193 = vmul.f32 %v65, %v189
    %v194 = vadd.f32 %v184, %v190
    %v195 = vadd.f32 %v185, %v191
    %v196 = vadd.f32 %v186, %v192
    %v197 = vadd.f32 %v187, %v193
    %v198 = vmax.f32 %v194, 0.0
    %v199 = vmax.f32 %v195, 0.0
    %v200 = vmax.f32 %v196, 0.0
    %v201 = vmax.f32 %v197, 0.0
    %s202 = sld [smem:[#allocation7 + $0x180]]
    %v203 = vstv %s202
    %v204 = vmul.f32 %v203, %v198
    %v205 = vmul.f32 %v203, %v199
    %v206 = vmul.f32 %v203, %v200
    %v207 = vmul.f32 %v203, %v201
    %v208 = vadd.f32 %v172, %v204
    %v209 = vadd.f32 %v173, %v205
    %v210 = vadd.f32 %v174, %v206
    %v211 = vadd.f32 %v175, %v207
    %s212 = sld [smem:[#allocation3 + $0x4]]
    %v213 = vstv %s212
    %v214 = vmul.f32 %v57, %v213
    %v215 = vmul.f32 %v58, %v213
    %v216 = vmul.f32 %v59, %v213
    %v217 = vmul.f32 %v60, %v213
    %s218 = sld [smem:[#allocation5 + $0x4]]
    %v219 = vstv %s218
    %v220 = vadd.f32 %v214, %v219
    %v221 = vadd.f32 %v215, %v219
    %v222 = vadd.f32 %v216, %v219
    %v223 = vadd.f32 %v217, %v219
    %s224 = sld [smem:[#allocation3 + $0x84]]
    %v225 = vstv %s224
    %v226 = vmul.f32 %v62, %v225
    %v227 = vmul.f32 %v63, %v225
    %v228 = vmul.f32 %v64, %v225
    %v229 = vmul.f32 %v65, %v225
    %v230 = vadd.f32 %v220, %v226
    %v231 = vadd.f32 %v221, %v227
    %v232 = vadd.f32 %v222, %v228
    %v233 = vadd.f32 %v223, %v229
    %v234 = vmax.f32 %v230, 0.0
    %v235 = vmax.f32 %v231, 0.0
    %v236 = vmax.f32 %v232, 0.0
    %v237 = vmax.f32 %v233, 0.0
    %s238 = sld [smem:[#allocation7 + $0x200]]
    %v239 = vstv %s238
    %v240 = vmul.f32 %v239, %v234
    %v241 = vmul.f32 %v239, %v235
    %v242 = vmul.f32 %v239, %v236
    %v243 = vmul.f32 %v239, %v237
    %v244 = vadd.f32 %v208, %v240
    %v245 = vadd.f32 %v209, %v241
    %v246 = vadd.f32 %v210, %v242
    %v247 = vadd.f32 %v211, %v243
    %v248 = vsub.f32 0.0, %v244
    %v249 = vsub.f32 0.0, %v245
    %v250 = vsub.f32 0.0, %v246
    %v251 = vsub.f32 0.0, %v247
    %v252 = vmul.f32 %v248, 1.442695
    %v253 = vpow.pop %v252
    %v254 = vmul.f32 %v249, 1.442695
    %v255 = vpow.pop %v254
    %v256 = vmul.f32 %v250, 1.442695
    %v257 = vpow.pop %v256
    %v258 = vmul.f32 %v251, 1.442695
    %v259 = vpow.pop %v258
    %v260 = vadd.f32 %v253, 1.0
    %v261 = vadd.f32 %v255, 1.0
    %v262 = vadd.f32 %v257, 1.0
    %v263 = vadd.f32 %v259, 1.0
    %v264 = vrcp.pop %v260
    %v265 = vmul.f32 %v260, %v264
    %v266 = vsub.f32 1.0, %v265
    %v267 = vmul.f32 %v264, %v266
    %v268 = vadd.f32 %v264, %v267
    %vm269 = vweird.f32 %v260
    %vm270 = vweird.f32 %v264
    %vm271 = vmor %vm269, %vm270
    %v272 = vsel %vm271, %v264, %v268
    %v273 = vand.u32 2147483647, %v260
    %vm274 = vcmp.eq.f32.partialorder %v273, 8.507059e+37
    %v275 = vand.u32 %v260, 2147483648
    %v276 = vor.u32 1.1754944e-38, %v275
    %v277 = vsel %vm274, %v276, %v272
    %v278 = vmul.f32 1.0, %v277
    %v279 = vrcp.pop %v261
    %v280 = vmul.f32 %v261, %v279
    %v281 = vsub.f32 1.0, %v280
    %v282 = vmul.f32 %v279, %v281
    %v283 = vadd.f32 %v279, %v282
    %vm284 = vweird.f32 %v261
    %vm285 = vweird.f32 %v279
    %vm286 = vmor %vm284, %vm285
    %v287 = vsel %vm286, %v279, %v283
    %v288 = vand.u32 2147483647, %v261
    %vm289 = vcmp.eq.f32.partialorder %v288, 8.507059e+37
    %v290 = vand.u32 %v261, 2147483648
    %v291 = vor.u32 1.1754944e-38, %v290
    %v292 = vsel %vm289, %v291, %v287
    %v293 = vmul.f32 1.0, %v292
    %v294 = vrcp.pop %v262
    %v295 = vmul.f32 %v262, %v294
    %v296 = vsub.f32 1.0, %v295
    %v297 = vmul.f32 %v294, %v296
    %v298 = vadd.f32 %v294, %v297
    %vm299 = vweird.f32 %v262
    %vm300 = vweird.f32 %v294
    %vm301 = vmor %vm299, %vm300
    %v302 = vsel %vm301, %v294, %v298
    %v303 = vand.u32 2147483647, %v262
    %vm304 = vcmp.eq.f32.partialorder %v303, 8.507059e+37
    %v305 = vand.u32 %v262, 2147483648
    %v306 = vor.u32 1.1754944e-38, %v305
    %v307 = vsel %vm304, %v306, %v302
    %v308 = vmul.f32 1.0, %v307
    %v309 = vrcp.pop %v263
    %v310 = vmul.f32 %v263, %v309
    %v311 = vsub.f32 1.0, %v310
    %v312 = vmul.f32 %v309, %v311
    %v313 = vadd.f32 %v309, %v312
    %vm314 = vweird.f32 %v263
    %vm315 = vweird.f32 %v309
    %vm316 = vmor %vm314, %vm315
    %v317 = vsel %vm316, %v309, %v313
    %v318 = vand.u32 2147483647, %v263
    %vm319 = vcmp.eq.f32.partialorder %v318, 8.507059e+37
    %v320 = vand.u32 %v263, 2147483648
    %v321 = vor.u32 1.1754944e-38, %v320
    %v322 = vsel %vm319, %v321, %v317
    %v323 = vmul.f32 1.0, %v322
    %324 = vst [vmem:[%s5] sm:$0xff] %v278
    %325 = vst [vmem:[%s5 + $0x8] sm:$0xff] %v293
    %326 = vst [vmem:[%s5 + $0x10] sm:$0xff] %v308
    %327 = vst [vmem:[%s5 + $0x18] sm:$0xff] %v323
    // Predicated region
    $region34: #{mlp_forward.1} parent=1 // pred_check
      _
    $region35: #{mlp_forward.1} parent=1 // pred_check_branch
      %329 = sbr.rel (0) target = $region37
    $region36: #{mlp_forward.1} parent=1 // pred_region
      _
    $region37: #{mlp_forward.1} parent=1 // pred_fallthru
      _
    // Predicated region
    $region38: #{mlp_forward.1} parent=1 // pred_check
      _
    $region39: #{mlp_forward.1} parent=1 // pred_check_branch
      %331 = sbr.rel (0) target = $region41
    $region40: #{mlp_forward.1} parent=1 // pred_region
      _
    $region41: #{mlp_forward.1} parent=1 // pred_fallthru
      _
    %332 = vsyncpa [#allocation4], 1
    %333 = vsyncpa [#allocation6], 1

</llo_original>
